<compile_context>
chip_gen: v6e
topology: v6e:2x2x1
jax: 0.10.0
libtpu: 0.0.40
codegen_flags: <defaults>
</compile_context>

<pallas_src>
import jax
import jax.numpy as jnp
from jax.experimental import pallas as pl
from jax.experimental.pallas import tpu as pltpu


def _round_up(n, m):
    return (n + m - 1) // m * m


def init_mlp_params(key, hidden_layers_size, in_features=5, out_features=1):
    """PyTorch-style Linear init: U(-1/sqrt(fan_in), 1/sqrt(fan_in))."""
    sizes = [in_features] + list(hidden_layers_size) + [out_features]
    params = []
    for i in range(len(sizes) - 1):
        fan_in, fan_out = sizes[i], sizes[i + 1]
        key, kw, kb = jax.random.split(key, 3)
        bound = 1.0 / float(fan_in) ** 0.5
        w = jax.random.uniform(kw, (fan_in, fan_out), jnp.float32, -bound, bound)
        b = jax.random.uniform(kb, (1, fan_out), jnp.float32, -bound, bound)
        params.append((w, b))
    return params


def pack_mlp_params(params, param_dtype=jnp.float32):
    """Pack all weights/biases into one lane-dense (rows, L) slab.

    L = round_up(max(in_features, *hidden_sizes), 128).
    Hidden layer i occupies rows [i*(L+8), (i+1)*(L+8)):
        rows [0, L)    : W_i zero-padded to (L, L).  Rows >= fan_in and lanes
                         >= fan_out are EXACTLY zero (required so the full
                         128-lane activation chain stays exact).
        row  L         : b_i zero-padded to L lanes.
        rows L+1..L+7  : zero.
    Output layer occupies the final 8 rows:
        row 0          : w_out^T zero-padded to L lanes.
        row 1          : [b_out, 0, ..., 0].
    Returns (packed, n_hidden, L).
    """
    hidden = params[:-1]
    w_out, b_out = params[-1]
    assert w_out.shape[1] == 1, "output layer must have out_features == 1"

    in_features = params[0][0].shape[0]
    widths = [in_features] + [w.shape[1] for w, _ in hidden]
    lane = _round_up(max(widths), 128)

    blocks = []
    for w, b in hidden:
        fan_in, fan_out = w.shape
        blk = jnp.zeros((lane + 8, lane), jnp.float32)
        blk = blk.at[:fan_in, :fan_out].set(w)
        blk = blk.at[lane, :fan_out].set(b.reshape(-1))
        blocks.append(blk)

    fan_in_last = w_out.shape[0]
    blk = jnp.zeros((8, lane), jnp.float32)
    blk = blk.at[0, :fan_in_last].set(w_out.reshape(-1))
    blk = blk.at[1, 0].set(b_out.reshape(-1)[0])
    blocks.append(blk)

    packed = jnp.concatenate(blocks, axis=0).astype(param_dtype)
    return packed, len(hidden), lane


def _make_mlp_kernel(n_hidden, lane):
    L = lane

    def sigmoid(z):
        # One EUP transcendental on the serial dependent chain (no exp overflow).
        return 0.5 * jnp.tanh(0.5 * z) + 0.5

    def kernel(x_ref, p_ref, o_ref):
        h = x_ref[...]                                     # (TB, L) f32, zero-padded lanes
        for i in range(n_hidden):
            row = i * (L + 8)
            w = p_ref[row:row + L, :]                      # whole (L, L) tile read
            b = p_ref[row + L:row + L + 1, :]              # (1, L) bias row
            z = jnp.dot(h.astype(w.dtype), w,              # MXU (bf16 operands if packed bf16)
                        preferred_element_type=jnp.float32)
            h = sigmoid(z + b.astype(jnp.float32))         # f32 VPU/EUP (v5e-friendly)
        # Output layer (out_features == 1): VPU multiply + XLU lane reduce.
        # Bias row only has lane 0 nonzero, so it folds into the same reduce.
        row = n_hidden * (L + 8)
        w_row = p_ref[row:row + 1, :].astype(jnp.float32)      # (1, L)
        b_row = p_ref[row + 1:row + 2, :].astype(jnp.float32)  # (1, L)
        o_ref[...] = jnp.sum(h * w_row + b_row, axis=-1, keepdims=True)

    return kernel


def mlp_forward(x, packed, n_hidden, lane, *, block_batch=256):
    """Run the fused MLP kernel.  x: (batch, in_features) float32 -> (batch, 1)."""
    batch, in_features = x.shape
    assert in_features <= lane

    tb = min(block_batch, _round_up(batch, 8))
    padded_batch = _round_up(batch, tb)

    # Wrapper-side layout plumbing: zero-pad x to (padded_batch, L) so the kernel
    # sees full (8,128)-tile, lane-dense blocks with no masked loads.  The zero
    # padding lanes multiply guaranteed-zero weight rows -> exact result.
    x_pad = jnp.zeros((padded_batch, lane), jnp.float32)
    x_pad = x_pad.at[:batch, :in_features].set(x.astype(jnp.float32))

    rows = packed.shape[0]
    kernel = _make_mlp_kernel(n_hidden, lane)

    # Advisory cost model (padded shapes) for XLA scheduling around the call.
    flops = n_hidden * 2 * padded_batch * lane * lane + 2 * padded_batch * lane
    transcendentals = n_hidden * padded_batch * lane
    bytes_accessed = (x_pad.size * x_pad.dtype.itemsize
                      + packed.size * packed.dtype.itemsize
                      + padded_batch * 4)

    out = pl.pallas_call(
        kernel,
        out_shape=jax.ShapeDtypeStruct((padded_batch, 1), jnp.float32),
        grid_spec=pltpu.PrefetchScalarGridSpec(
            num_scalar_prefetch=0,
            grid=(padded_batch // tb,),
            in_specs=[
                pl.BlockSpec((tb, lane), lambda i: (i, 0)),    # batch-tiled x
                pl.BlockSpec((rows, lane), lambda i: (0, 0)),  # resident params
            ],
            out_specs=pl.BlockSpec((tb, 1), lambda i: (i, 0)),
        ),
        compiler_params=pltpu.CompilerParams(
            dimension_semantics=("parallel",),   # v7x: shard batch tiles across 2 TCs
        ),
        cost_estimate=pl.CostEstimate(
            flops=flops,
            transcendentals=transcendentals,
            bytes_accessed=bytes_accessed,
        ),
    )(x_pad, packed)
    return out[:batch]


def mlp_reference(x, params):
    """Plain-JAX reference matching the PyTorch forward."""
    h = x
    for w, b in params[:-1]:
        h = jax.nn.sigmoid(h @ w + b)
    w_out, b_out = params[-1]
    return h @ w_out + b_out


if __name__ == "__main__":
    key = jax.random.PRNGKey(0)
    k_x, k_p = jax.random.split(key)

    hidden_layers_size = (32, 16)          # MLP(hidden_layers_size=[32, 16])
    batch = 512                            # amortize launch cost; grid = 2 tiles of 256
    x = jax.random.normal(k_x, (batch, 5), dtype=jnp.float32)

    params = init_mlp_params(k_p, hidden_layers_size)
    ref = mlp_reference(x, params)

    # f32 parameter path: tight tolerance validates packing / padding / matmul /
    # bias / tanh-sigmoid math.
    packed_f32, n_hidden, lane = pack_mlp_params(params, jnp.float32)
    out_f32 = jax.block_until_ready(
        mlp_forward(x, packed_f32, n_hidden, lane, block_batch=256))
    assert out_f32.shape == (batch, 1), out_f32.shape
    assert jnp.allclose(out_f32, ref, atol=1e-4, rtol=1e-4), "f32 path mismatch"

    # bf16 parameter path (v6e/v7x MXU fast path): bf16 dot operands, f32
    # accumulation and f32 elementwise; looser tolerance for the quantization.
    packed_bf16, n_hidden, lane = pack_mlp_params(params, jnp.bfloat16)
    out_bf16 = jax.block_until_ready(
        mlp_forward(x, packed_bf16, n_hidden, lane, block_batch=256))
    assert out_bf16.shape == (batch, 1), out_bf16.shape
    assert jnp.allclose(out_bf16, ref, atol=5e-2, rtol=5e-2), "bf16 path mismatch"

    print("KERNEL_OK")
</pallas_src>

<mosaic_0001>
module attributes {stable_mosaic.version = 11 : i64} {
  func.func @kernel(%arg0: i32, %arg1: memref<256x128xf32, #tpu.memory_space<vmem>>, %arg2: memref<280x128xf32, #tpu.memory_space<vmem>>, %arg3: memref<256x1xf32, #tpu.memory_space<vmem>>) attributes {dimension_semantics = [#tpu.dimension_semantics<parallel>], iteration_bounds = array<i64: 2>, scalar_prefetch = 0 : i64, scratch_operands = 0 : i64, tpu.core_type = #tpu.core_type<tc>, window_params = [{transform_indices = @transform_0, window_bounds = array<i64: 256, 128>}, {pipeline_mode = #tpu.pipeline_mode<synchronous>, transform_indices = @transform_1, window_bounds = array<i64: 280, 128>}, {transform_indices = @transform_2, window_bounds = array<i64: 256, 1>}]} {
    %c0 = arith.constant 0 : index
    %c0_0 = arith.constant 0 : index
    %0 = vector.load %arg1[%c0, %c0_0] : memref<256x128xf32, #tpu.memory_space<vmem>>, vector<256x128xf32>
    %c0_1 = arith.constant 0 : index
    %c0_2 = arith.constant 0 : index
    %1 = vector.load %arg2[%c0_1, %c0_2] : memref<280x128xf32, #tpu.memory_space<vmem>>, vector<128x128xf32>
    %c128 = arith.constant 128 : index
    %c0_3 = arith.constant 0 : index
    %2 = vector.load %arg2[%c128, %c0_3] : memref<280x128xf32, #tpu.memory_space<vmem>>, vector<1x128xf32>
    %cst = arith.constant dense<0.000000e+00> : vector<256x128xf32>
    %3 = tpu.matmul %0, %1, %cst {dimension_numbers = #tpu.dot_dimension_numbers<[1], [0], [0], [1], [0, 0, 1, 1], [], []>} : vector<256x128xf32>, vector<128x128xf32>, vector<256x128xf32> -> vector<256x128xf32>
    %4 = vector.broadcast %2 : vector<1x128xf32> to vector<256x128xf32>
    %5 = arith.addf %3, %4 : vector<256x128xf32>
    %cst_4 = arith.constant 5.000000e-01 : f32
    %6 = vector.broadcast %cst_4 : f32 to vector<256x128xf32>
    %7 = arith.mulf %6, %5 : vector<256x128xf32>
    %8 = math.tanh %7 : vector<256x128xf32>
    %cst_5 = arith.constant 5.000000e-01 : f32
    %9 = vector.broadcast %cst_5 : f32 to vector<256x128xf32>
    %10 = arith.mulf %9, %8 : vector<256x128xf32>
    %cst_6 = arith.constant 5.000000e-01 : f32
    %11 = vector.broadcast %cst_6 : f32 to vector<256x128xf32>
    %12 = arith.addf %10, %11 : vector<256x128xf32>
    %c136 = arith.constant 136 : index
    %c0_7 = arith.constant 0 : index
    %13 = vector.load %arg2[%c136, %c0_7] : memref<280x128xf32, #tpu.memory_space<vmem>>, vector<128x128xf32>
    %c264 = arith.constant 264 : index
    %c0_8 = arith.constant 0 : index
    %14 = vector.load %arg2[%c264, %c0_8] : memref<280x128xf32, #tpu.memory_space<vmem>>, vector<1x128xf32>
    %cst_9 = arith.constant dense<0.000000e+00> : vector<256x128xf32>
    %15 = tpu.matmul %12, %13, %cst_9 {dimension_numbers = #tpu.dot_dimension_numbers<[1], [0], [0], [1], [0, 0, 1, 1], [], []>} : vector<256x128xf32>, vector<128x128xf32>, vector<256x128xf32> -> vector<256x128xf32>
    %16 = vector.broadcast %14 : vector<1x128xf32> to vector<256x128xf32>
    %17 = arith.addf %15, %16 : vector<256x128xf32>
    %cst_10 = arith.constant 5.000000e-01 : f32
    %18 = vector.broadcast %cst_10 : f32 to vector<256x128xf32>
    %19 = arith.mulf %18, %17 : vector<256x128xf32>
    %20 = math.tanh %19 : vector<256x128xf32>
    %cst_11 = arith.constant 5.000000e-01 : f32
    %21 = vector.broadcast %cst_11 : f32 to vector<256x128xf32>
    %22 = arith.mulf %21, %20 : vector<256x128xf32>
    %cst_12 = arith.constant 5.000000e-01 : f32
    %23 = vector.broadcast %cst_12 : f32 to vector<256x128xf32>
    %24 = arith.addf %22, %23 : vector<256x128xf32>
    %c272 = arith.constant 272 : index
    %c0_13 = arith.constant 0 : index
    %25 = vector.load %arg2[%c272, %c0_13] : memref<280x128xf32, #tpu.memory_space<vmem>>, vector<1x128xf32>
    %c273 = arith.constant 273 : index
    %c0_14 = arith.constant 0 : index
    %26 = vector.load %arg2[%c273, %c0_14] : memref<280x128xf32, #tpu.memory_space<vmem>>, vector<1x128xf32>
    %27 = vector.broadcast %25 : vector<1x128xf32> to vector<256x128xf32>
    %28 = arith.mulf %24, %27 : vector<256x128xf32>
    %29 = vector.broadcast %26 : vector<1x128xf32> to vector<256x128xf32>
    %30 = arith.addf %28, %29 : vector<256x128xf32>
    %cst_15 = arith.constant dense<0.000000e+00> : vector<256xf32>
    %31 = vector.multi_reduction <add>, %30, %cst_15 [1] : vector<256x128xf32> to vector<256xf32>
    %32 = vector.shape_cast %31 : vector<256xf32> to vector<256x1xf32>
    %c0_16 = arith.constant 0 : index
    %c0_17 = arith.constant 0 : index
    %33 = vector.load %arg3[%c0_16, %c0_17] : memref<256x1xf32, #tpu.memory_space<vmem>>, vector<256x1xf32>
    tpu.vector_store %arg3[%c0_16, %c0_17], %32 {strides = array<i32>} : memref<256x1xf32, #tpu.memory_space<vmem>>, vector<256x1xf32>,
    return
  }
  func.func @transform_0(%arg0: i32) -> (i32, i32) {
    %c0_i32 = arith.constant 0 : i32
    %c0_i32_0 = arith.constant 0 : i32
    return %arg0, %c0_i32 : i32, i32
  }
  func.func @transform_1(%arg0: i32) -> (i32, i32) {
    %c0_i32 = arith.constant 0 : i32
    %c0_i32_0 = arith.constant 0 : i32
    %c0_i32_1 = arith.constant 0 : i32
    return %c0_i32, %c0_i32_0 : i32, i32
  }
  func.func @transform_2(%arg0: i32) -> (i32, i32) {
    %c0_i32 = arith.constant 0 : i32
    %c0_i32_0 = arith.constant 0 : i32
    return %arg0, %c0_i32 : i32, i32
  }
}

</mosaic_0001>

<llo_original>
// kernel: tpu_custom_call.1
$region0: #{tpu_custom_call.1}
  #allocation0 [shape = 'u32[]', space=smem, size = 0x4, offset = 0x4, fixed_abs, tag = 'smem constant byte address 0x4 - core index']
  #allocation1 [shape = 'u32[144,128]{1,0:T(1,128)}', space=vmem, size = 0x12000, scoped, tag = 'internal scratch']
  %s0 = inlined_call_operand.hbm [shape: f32[512,128], index: 0, kind: input, shape index: {}]
  %s1 = inlined_call_operand.hbm [shape: f32[280,128], index: 1, kind: input, shape index: {}]
  %s2 = inlined_call_operand.vmem [shape: f32[512,1], index: 2, kind: output, shape index: {}]
  %s3 = sld [smem:[#allocation0]]
  $region49: #{tpu_custom_call.1} parent=0
    _
  %s5 = ssub.s32 1, %s3
  %s6 = scalar_select 0, %s5, %s3
  $region1: #{tpu_custom_call.1} parent=0
    #allocation2 [shape = 'u8[262144]{0}', space=vmem, size = 0x40000, scoped, tag = 'input window, operand 0']
    #allocation3 [shape = 's32[2]{0}', space=sflag, size = 0x8, scoped, tag = 'scoped memory for tpu_custom_call.1']
    #allocation4 [shape = 'u8[143360]{0}', space=vmem, size = 0x23000, scoped, tag = 'input window, operand 1, single buffered']
    #allocation5 [shape = 's32[1]{0}', space=sflag, size = 0x4, scoped, tag = 'scoped memory for tpu_custom_call.1']
    %7 = vsyncpa [#allocation3], 0
    %s8 = scalar_lea.sflag [#allocation3], 1
    %9 = vsyncpa %s8, 0
    %10 = vsyncpa [#allocation5], 0
    loop: start=0, step=1, limit=4
    $region2: #{tpu_custom_call.1} parent=1 // loop_pre_header
      _
    $region3: #{tpu_custom_call.1} parent=1 // loop_header
      %s12 = sphi 0, %s16
      %p13 = scmp.ge.s32.totalorder %s12, 4
      %s22 = sphi 0, %s24
      %s25 = sphi 0, %s22
      %s26 = sphi 0, %s25
      %s42 = sphi 0, %s26
      %s46 = sphi 0, %s46
      %s48 = sphi 0, %s46
      %s49 = sphi 0, %s48
      %s63 = sphi 0, %s49
      %s69 = sphi 0, %s71
      %s72 = sphi 0, %s69
      %s73 = sphi 0, %s72
      %s89 = sphi 0, %s73
    $region4: #{tpu_custom_call.1} parent=1 // loop_header_branch
      %15 = sbr.rel (%p13) target = $region8
    $region5: #{tpu_custom_call.1} parent=1 // loop_body
      %s17 = ssub.s32 %s12, 1
      %s18 = ssub.s32 %s12, 2
      %s19 = sadd.s32 %s12, 1
      %s20 = ssub.s32 %s12, %s19
      %p21 = scmp.eq.s32.totalorder %s20, 0
      %s23 = sadd.s32 %s22, 1
      %s24 = scalar_select %p21, %s22, %s23
      %p27 = pneg %p21
      %p28 = scmp.eq.s32.totalorder %s12, 1
      %p29 = por %p27, %p28
      %p30 = scmp.ne.s32.totalorder %s22, %s25
      %p31 = scmp.eq.s32.totalorder %s12, 0
      %p32 = por %p30, %p31
      %p33 = scmp.ne.s32.totalorder %s22, %s25
      %p34 = scmp.eq.s32.totalorder %s17, 1
      %p35 = por %p33, %p34
      %p36 = scmp.ne.s32.totalorder %s25, %s26
      %p37 = scmp.eq.s32.totalorder %s17, 0
      %p38 = por %p36, %p37
      %p39 = scmp.ne.s32.totalorder %s25, %s26
      %p40 = scmp.eq.s32.totalorder %s18, 1
      %p41 = por %p39, %p40
      %p43 = scmp.ne.s32.totalorder %s26, %s42
      %p44 = scmp.eq.s32.totalorder %s18, 0
      %p45 = por %p43, %p44
      %s47 = sadd.s32 %s46, 1
      %p50 = scmp.eq.s32.totalorder %s12, 1
      %p51 = scmp.ne.s32.totalorder %s46, %s48
      %p52 = scmp.eq.s32.totalorder %s12, 0
      %p53 = por %p51, %p52
      %p54 = scmp.ne.s32.totalorder %s46, %s48
      %p55 = scmp.eq.s32.totalorder %s17, 1
      %p56 = por %p54, %p55
      %p57 = scmp.ne.s32.totalorder %s48, %s49
      %p58 = scmp.eq.s32.totalorder %s17, 0
      %p59 = por %p57, %p58
      %p60 = scmp.ne.s32.totalorder %s48, %s49
      %p61 = scmp.eq.s32.totalorder %s18, 1
      %p62 = por %p60, %p61
      %p64 = scmp.ne.s32.totalorder %s49, %s63
      %p65 = scmp.eq.s32.totalorder %s18, 0
      %p66 = por %p64, %p65
      %s67 = ssub.s32 %s12, %s19
      %p68 = scmp.eq.s32.totalorder %s67, 0
      %s70 = sadd.s32 %s69, 1
      %s71 = scalar_select %p68, %s69, %s70
      %p74 = pneg %p68
      %p75 = scmp.eq.s32.totalorder %s12, 1
      %p76 = por %p74, %p75
      %p77 = scmp.ne.s32.totalorder %s69, %s72
      %p78 = scmp.eq.s32.totalorder %s12, 0
      %p79 = por %p77, %p78
      %p80 = scmp.ne.s32.totalorder %s69, %s72
      %p81 = scmp.eq.s32.totalorder %s17, 1
      %p82 = por %p80, %p81
      %p83 = scmp.ne.s32.totalorder %s72, %s73
      %p84 = scmp.eq.s32.totalorder %s17, 0
      %p85 = por %p83, %p84
      %p86 = scmp.ne.s32.totalorder %s72, %s73
      %p87 = scmp.eq.s32.totalorder %s18, 1
      %p88 = por %p86, %p87
      %p90 = scmp.ne.s32.totalorder %s73, %s89
      %p91 = scmp.eq.s32.totalorder %s18, 0
      %p92 = por %p90, %p91
      %p93 = scmp.le.s32.totalorder 1, %s12
      %p94 = scmp.lt.s32.totalorder %s12, 3
      %p95 = pnand %p93, %p94
      %p96 = pneg %p95
      // Predicated region
      $region9: #{tpu_custom_call.1} parent=5 // pred_check
        _
      $region10: #{tpu_custom_call.1} parent=5 // pred_check_branch
        %98 = sbr.rel (%p95) target = $region12
      $region11: #{tpu_custom_call.1} parent=5 // pred_region
        %s99 = ssub.s32 %s12, 1
        // Predicated region
        $region13: #{tpu_custom_call.1} parent=11 // pred_check
          %p100 = pneg %p59
        $region14: #{tpu_custom_call.1} parent=11 // pred_check_branch
          %102 = sbr.rel (%p100) target = $region16
        $region15: #{tpu_custom_call.1} parent=11 // pred_region
          %s104 = ssub.s32 4480, 4480
          %105 = vsyncadd [#allocation5], %s104
          %s106 = sshll.u32 [#allocation4], 4
          %s107 = int_to_ptr.vmem [resolvable:$true] %s106
          %112 = dma.hbm_to_vmem [thread:$0]  %s1, 4480, %s107, [#allocation5], 128, 128, 8
        $region16: #{tpu_custom_call.1} parent=11 // pred_fallthru
          _
      $region12: #{tpu_custom_call.1} parent=5 // pred_fallthru
        _
      %p113 = scmp.lt.s32.totalorder %s12, 2
      // Predicated region
      $region17: #{tpu_custom_call.1} parent=5 // pred_check
        %p114 = pneg %p113
      $region18: #{tpu_custom_call.1} parent=5 // pred_check_branch
        %116 = sbr.rel (%p114) target = $region20
      $region19: #{tpu_custom_call.1} parent=5 // pred_region
        // Predicated region
        $region21: #{tpu_custom_call.1} parent=19 // pred_check
          %p117 = pneg %p32
        $region22: #{tpu_custom_call.1} parent=19 // pred_check_branch
          %119 = sbr.rel (%p117) target = $region24
        $region23: #{tpu_custom_call.1} parent=19 // pred_region
          %s120 = sand.u32 %s22, 1
          %s121 = scalar_lea.sflag [#allocation3], %s120
          %s122 = sand.u32 %s22, 1
          %s123 = smul.addr %s122, 256
          %s124 = scalar_lea.vmem [#allocation2], %s123
          %s125 = smul.u32 32, %s12
          %s127 = ssub.s32 4096, 4096
          %128 = vsyncadd %s121, %s127
          %s129 = smul.addr %s125, 128
          %s130 = scalar_lea.hbm %s0, %s129
          %s131 = sshll.u32 %s124, 4
          %s132 = int_to_ptr.vmem [resolvable:$true] %s131
          %137 = dma.hbm_to_vmem [thread:$0]  %s130, 4096, %s132, %s121, 128, 128, 8
        $region24: #{tpu_custom_call.1} parent=19 // pred_fallthru
          _
      $region20: #{tpu_custom_call.1} parent=5 // pred_fallthru
        _
      %p138 = scmp.le.s32.totalorder 1, %s12
      %p139 = scmp.lt.s32.totalorder %s12, 3
      %p140 = pnand %p138, %p139
      %p141 = pneg %p140
      // Predicated region
      $region25: #{tpu_custom_call.1} parent=5 // pred_check
        _
      $region26: #{tpu_custom_call.1} parent=5 // pred_check_branch
        %143 = sbr.rel (%p140) target = $region28
      $region27: #{tpu_custom_call.1} parent=5 // pred_region
        %s144 = ssub.s32 %s12, 1
        %s145 = sand.u32 %s25, 1
        %s146 = scalar_lea.sflag [#allocation3], %s145
        %s147 = sand.u32 %s25, 1
        %s148 = smul.addr %s147, 256
        %s149 = scalar_lea.vmem [#allocation2], %s148
        // Predicated region
        $region29: #{tpu_custom_call.1} parent=27 // pred_check
          %p150 = pneg %p38
        $region30: #{tpu_custom_call.1} parent=27 // pred_check_branch
          %152 = sbr.rel (%p150) target = $region32
        $region31: #{tpu_custom_call.1} parent=27 // pred_region
          %153 = dma.done %s146, 4096
        $region32: #{tpu_custom_call.1} parent=27 // pred_fallthru
          _
        // Predicated region
        $region33: #{tpu_custom_call.1} parent=27 // pred_check
          %p154 = pneg %p59
        $region34: #{tpu_custom_call.1} parent=27 // pred_check_branch
          %156 = sbr.rel (%p154) target = $region36
        $region35: #{tpu_custom_call.1} parent=27 // pred_region
          %157 = dma.done [#allocation5], 4480
        $region36: #{tpu_custom_call.1} parent=27 // pred_fallthru
          _
        %s158 = sand.u32 %s25, 1
        %s159 = scalar_lea.sflag [#allocation3], %s158
        %s160 = sand.u32 %s25, 1
        %s161 = smul.addr %s160, 256
        %s162 = scalar_lea.vmem [#allocation2], %s161
        %p163 = pneg %p38
        %p164 = pneg %p35
        %p165 = pneg %p59
        %p166 = pneg %p56
        %p167 = pneg %p85
        %p168 = pneg %p82
        %s169 = smul.u32 32, %s17
        %p170 = scmp.lt.s32.totalorder %s169, 63
        %s171 = scalar_select %p170, %s169, 63
        %s172 = smul.addr %s171, 8
        %s173 = scalar_lea.vmem %s2, %s172
        %s174 = smul.u32 32, %s17
        %s175 = smul.u32 32, %s17
        %p176 = scmp.lt.s32.totalorder %s175, 63
        %s177 = scalar_select %p176, %s175, 63
        %s178 = smul.addr %s177, 8
        %s179 = scalar_lea.vmem %s2, %s178
        %s180 = smul.u32 32, %s17
        %v181 = vld [vmem:[%s149] sm:$0xff]
        %v182 = vld [vmem:[%s149 + $0x8] sm:$0xff]
        %v183 = vld [vmem:[%s149 + $0x10] sm:$0xff]
        %v184 = vld [vmem:[%s149 + $0x18] sm:$0xff]
        %v185 = vld [vmem:[%s149 + $0x20] sm:$0xff]
        %v186 = vld [vmem:[%s149 + $0x28] sm:$0xff]
        %v187 = vld [vmem:[%s149 + $0x30] sm:$0xff]
        %v188 = vld [vmem:[%s149 + $0x38] sm:$0xff]
        %v189 = vld [vmem:[%s149 + $0x40] sm:$0xff]
        %v190 = vld [vmem:[%s149 + $0x48] sm:$0xff]
        %v191 = vld [vmem:[%s149 + $0x50] sm:$0xff]
        %v192 = vld [vmem:[%s149 + $0x58] sm:$0xff]
        %v193 = vld [vmem:[%s149 + $0x60] sm:$0xff]
        %v194 = vld [vmem:[%s149 + $0x68] sm:$0xff]
        %v195 = vld [vmem:[%s149 + $0x70] sm:$0xff]
        %v196 = vld [vmem:[%s149 + $0x78] sm:$0xff]
        %v197 = vld [vmem:[%s149 + $0x80] sm:$0xff]
        %v198 = vld [vmem:[%s149 + $0x88] sm:$0xff]
        %v199 = vld [vmem:[%s149 + $0x90] sm:$0xff]
        %v200 = vld [vmem:[%s149 + $0x98] sm:$0xff]
        %v201 = vld [vmem:[%s149 + $0xa0] sm:$0xff]
        %v202 = vld [vmem:[%s149 + $0xa8] sm:$0xff]
        %v203 = vld [vmem:[%s149 + $0xb0] sm:$0xff]
        %v204 = vld [vmem:[%s149 + $0xb8] sm:$0xff]
        %v205 = vld [vmem:[%s149 + $0xc0] sm:$0xff]
        %v206 = vld [vmem:[%s149 + $0xc8] sm:$0xff]
        %v207 = vld [vmem:[%s149 + $0xd0] sm:$0xff]
        %v208 = vld [vmem:[%s149 + $0xd8] sm:$0xff]
        %v209 = vld [vmem:[%s149 + $0xe0] sm:$0xff]
        %v210 = vld [vmem:[%s149 + $0xe8] sm:$0xff]
        %v211 = vld [vmem:[%s149 + $0xf0] sm:$0xff]
        %v212 = vld [vmem:[%s149 + $0xf8] sm:$0xff]
        %v213 = vld [vmem:[#allocation4] sm:$0xff]
        %v214 = vld [vmem:[#allocation4 + $0x8] sm:$0xff]
        %v215 = vld [vmem:[#allocation4 + $0x10] sm:$0xff]
        %v216 = vld [vmem:[#allocation4 + $0x18] sm:$0xff]
        %v217 = vld [vmem:[#allocation4 + $0x20] sm:$0xff]
        %v218 = vld [vmem:[#allocation4 + $0x28] sm:$0xff]
        %v219 = vld [vmem:[#allocation4 + $0x30] sm:$0xff]
        %v220 = vld [vmem:[#allocation4 + $0x38] sm:$0xff]
        %v221 = vld [vmem:[#allocation4 + $0x40] sm:$0xff]
        %v222 = vld [vmem:[#allocation4 + $0x48] sm:$0xff]
        %v223 = vld [vmem:[#allocation4 + $0x50] sm:$0xff]
        %v224 = vld [vmem:[#allocation4 + $0x58] sm:$0xff]
        %v225 = vld [vmem:[#allocation4 + $0x60] sm:$0xff]
        %v226 = vld [vmem:[#allocation4 + $0x68] sm:$0xff]
        %v227 = vld [vmem:[#allocation4 + $0x70] sm:$0xff]
        %v228 = vld [vmem:[#allocation4 + $0x78] sm:$0xff]
        %v229 = vld [vmem:[#allocation4 + $0x80] sm:$0x1]
        %v230 = vlaneseq
        %v231 = vshrl.u32 %v230, 7
        %v232 = vsub.s32 0, %v231
        %v233 = vrot.slane %v229, %v232
        %234 = vmatprep.subr.mxu0 0.0
        %235 = vmatpush1.msra.mxu0 %v228
        %236 = vmatprep.subr.mxu0 0.0
        %237 = vmatpush1.msra.mxu0 %v227
        %238 = vmatprep.subr.mxu0 0.0
        %239 = vmatpush1.msra.mxu0 %v226
        %240 = vmatprep.subr.mxu0 0.0
        %241 = vmatpush1.msra.mxu0 %v225
        %242 = vmatprep.subr.mxu0 0.0
        %243 = vmatpush1.msra.mxu0 %v224
        %244 = vmatprep.subr.mxu0 0.0
        %245 = vmatpush1.msra.mxu0 %v223
        %246 = vmatprep.subr.mxu0 0.0
        %247 = vmatpush1.msra.mxu0 %v222
        %248 = vmatprep.subr.mxu0 0.0
        %249 = vmatpush1.msra.mxu0 %v221
        %250 = vmatprep.subr.mxu0 0.0
        %251 = vmatpush1.msra.mxu0 %v220
        %252 = vmatprep.subr.mxu0 0.0
        %253 = vmatpush1.msra.mxu0 %v219
        %254 = vmatprep.subr.mxu0 0.0
        %255 = vmatpush1.msra.mxu0 %v218
        %256 = vmatprep.subr.mxu0 0.0
        %257 = vmatpush1.msra.mxu0 %v217
        %258 = vmatprep.subr.mxu0 0.0
        %259 = vmatpush1.msra.mxu0 %v216
        %260 = vmatprep.subr.mxu0 0.0
        %261 = vmatpush1.msra.mxu0 %v215
        %262 = vmatprep.subr.mxu0 0.0
        %263 = vmatpush1.msra.mxu0 %v214
        %264 = vmatprep.subr.mxu0 0.0
        %265 = vmatpush1.msra.mxu0 %v213
        %266 = vmatprep.subr.mxu0 0.0
        %267 = vmatpush2.msra.mxu0 0.0
        %268 = vmatprep.subr.mxu0 0.0
        %269 = vmatpush2.msra.mxu0 0.0
        %270 = vmatprep.subr.mxu0 0.0
        %271 = vmatpush2.msra.mxu0 0.0
        %272 = vmatprep.subr.mxu0 0.0
        %273 = vmatpush2.msra.mxu0 0.0
        %274 = vmatprep.subr.mxu0 0.0
        %275 = vmatpush2.msra.mxu0 0.0
        %276 = vmatprep.subr.mxu0 0.0
        %277 = vmatpush2.msra.mxu0 0.0
        %278 = vmatprep.subr.mxu0 0.0
        %279 = vmatpush2.msra.mxu0 0.0
        %280 = vmatprep.subr.mxu0 0.0
        %281 = vmatpush2.msra.mxu0 0.0
        %282 = vmatprep.subr.mxu0 0.0
        %283 = vmatpush2.msra.mxu0 0.0
        %284 = vmatprep.subr.mxu0 0.0
        %285 = vmatpush2.msra.mxu0 0.0
        %286 = vmatprep.subr.mxu0 0.0
        %287 = vmatpush2.msra.mxu0 0.0
        %288 = vmatprep.subr.mxu0 0.0
        %289 = vmatpush2.msra.mxu0 0.0
        %290 = vmatprep.subr.mxu0 0.0
        %291 = vmatpush2.msra.mxu0 0.0
        %292 = vmatprep.subr.mxu0 0.0
        %293 = vmatpush2.msra.mxu0 0.0
        %294 = vmatprep.subr.mxu0 0.0
        %295 = vmatpush2.msra.mxu0 0.0
        %296 = vmatprep.subr.mxu0 0.0
        %297 = vmatpush2.msra.mxu0 0.0
        %298 = vmatprep.mubr.f32.mxu0 0.0
        %299 = vmatmul.mubr.f32.gmra.mxu0 %v181
        %v300 = vpop.f32.mrf.mxu0
        %v301 = vadd.f32 %v233, %v300
        %v302 = vpop.f32.mrf.mxu0
        %303 = vmatprep.mubr.f32.mxu0 0.0
        %304 = vmatmul.mubr.f32.gmra.mxu0 %v182
        %v305 = vpop.f32.mrf.mxu0
        %v306 = vadd.f32 %v233, %v305
        %v307 = vpop.f32.mrf.mxu0
        %308 = vmatprep.mubr.f32.mxu0 0.0
        %309 = vmatmul.mubr.f32.gmra.mxu0 %v183
        %v310 = vpop.f32.mrf.mxu0
        %v311 = vadd.f32 %v233, %v310
        %v312 = vpop.f32.mrf.mxu0
        %313 = vmatprep.mubr.f32.mxu0 0.0
        %314 = vmatmul.mubr.f32.gmra.mxu0 %v184
        %v315 = vpop.f32.mrf.mxu0
        %v316 = vadd.f32 %v233, %v315
        %v317 = vpop.f32.mrf.mxu0
        %318 = vmatprep.mubr.f32.mxu0 0.0
        %319 = vmatmul.mubr.f32.gmra.mxu0 %v185
        %v320 = vpop.f32.mrf.mxu0
        %v321 = vadd.f32 %v233, %v320
        %v322 = vpop.f32.mrf.mxu0
        %323 = vmatprep.mubr.f32.mxu0 0.0
        %324 = vmatmul.mubr.f32.gmra.mxu0 %v186
        %v325 = vpop.f32.mrf.mxu0
        %v326 = vadd.f32 %v233, %v325
        %v327 = vpop.f32.mrf.mxu0
        %328 = vmatprep.mubr.f32.mxu0 0.0
        %329 = vmatmul.mubr.f32.gmra.mxu0 %v187
        %v330 = vpop.f32.mrf.mxu0
        %v331 = vadd.f32 %v233, %v330
        %v332 = vpop.f32.mrf.mxu0
        %333 = vmatprep.mubr.f32.mxu0 0.0
        %334 = vmatmul.mubr.f32.gmra.mxu0 %v188
        %v335 = vpop.f32.mrf.mxu0
        %v336 = vadd.f32 %v233, %v335
        %v337 = vpop.f32.mrf.mxu0
        %338 = vmatprep.mubr.f32.mxu0 0.0
        %339 = vmatmul.mubr.f32.gmra.mxu0 %v189
        %v340 = vpop.f32.mrf.mxu0
        %v341 = vadd.f32 %v233, %v340
        %v342 = vpop.f32.mrf.mxu0
        %343 = vmatprep.mubr.f32.mxu0 0.0
        %344 = vmatmul.mubr.f32.gmra.mxu0 %v190
        %v345 = vpop.f32.mrf.mxu0
        %v346 = vadd.f32 %v233, %v345
        %v347 = vpop.f32.mrf.mxu0
        %348 = vmatprep.mubr.f32.mxu0 0.0
        %349 = vmatmul.mubr.f32.gmra.mxu0 %v191
        %v350 = vpop.f32.mrf.mxu0
        %v351 = vadd.f32 %v233, %v350
        %v352 = vpop.f32.mrf.mxu0
        %353 = vmatprep.mubr.f32.mxu0 0.0
        %354 = vmatmul.mubr.f32.gmra.mxu0 %v192
        %v355 = vpop.f32.mrf.mxu0
        %v356 = vadd.f32 %v233, %v355
        %v357 = vpop.f32.mrf.mxu0
        %358 = vmatprep.mubr.f32.mxu0 0.0
        %359 = vmatmul.mubr.f32.gmra.mxu0 %v193
        %v360 = vpop.f32.mrf.mxu0
        %v361 = vadd.f32 %v233, %v360
        %v362 = vpop.f32.mrf.mxu0
        %363 = vmatprep.mubr.f32.mxu0 0.0
        %364 = vmatmul.mubr.f32.gmra.mxu0 %v194
        %v365 = vpop.f32.mrf.mxu0
        %v366 = vadd.f32 %v233, %v365
        %v367 = vpop.f32.mrf.mxu0
        %368 = vmatprep.mubr.f32.mxu0 0.0
        %369 = vmatmul.mubr.f32.gmra.mxu0 %v195
        %v370 = vpop.f32.mrf.mxu0
        %v371 = vadd.f32 %v233, %v370
        %v372 = vpop.f32.mrf.mxu0
        %373 = vmatprep.mubr.f32.mxu0 0.0
        %374 = vmatmul.mubr.f32.gmra.mxu0 %v196
        %v375 = vpop.f32.mrf.mxu0
        %v376 = vadd.f32 %v233, %v375
        %v377 = vpop.f32.mrf.mxu0
        %378 = vmatprep.mubr.f32.mxu0 0.0
        %379 = vmatmul.mubr.f32.gmra.mxu0 %v197
        %v380 = vpop.f32.mrf.mxu0
        %v381 = vadd.f32 %v233, %v380
        %v382 = vpop.f32.mrf.mxu0
        %383 = vmatprep.mubr.f32.mxu0 0.0
        %384 = vmatmul.mubr.f32.gmra.mxu0 %v198
        %v385 = vpop.f32.mrf.mxu0
        %v386 = vadd.f32 %v233, %v385
        %v387 = vpop.f32.mrf.mxu0
        %388 = vmatprep.mubr.f32.mxu0 0.0
        %389 = vmatmul.mubr.f32.gmra.mxu0 %v199
        %v390 = vpop.f32.mrf.mxu0
        %v391 = vadd.f32 %v233, %v390
        %v392 = vpop.f32.mrf.mxu0
        %393 = vmatprep.mubr.f32.mxu0 0.0
        %394 = vmatmul.mubr.f32.gmra.mxu0 %v200
        %v395 = vpop.f32.mrf.mxu0
        %v396 = vadd.f32 %v233, %v395
        %v397 = vpop.f32.mrf.mxu0
        %398 = vmatprep.mubr.f32.mxu0 0.0
        %399 = vmatmul.mubr.f32.gmra.mxu0 %v201
        %v400 = vpop.f32.mrf.mxu0
        %v401 = vadd.f32 %v233, %v400
        %v402 = vpop.f32.mrf.mxu0
        %403 = vmatprep.mubr.f32.mxu0 0.0
        %404 = vmatmul.mubr.f32.gmra.mxu0 %v202
        %v405 = vpop.f32.mrf.mxu0
        %v406 = vadd.f32 %v233, %v405
        %v407 = vpop.f32.mrf.mxu0
        %408 = vmatprep.mubr.f32.mxu0 0.0
        %409 = vmatmul.mubr.f32.gmra.mxu0 %v203
        %v410 = vpop.f32.mrf.mxu0
        %v411 = vadd.f32 %v233, %v410
        %v412 = vpop.f32.mrf.mxu0
        %413 = vmatprep.mubr.f32.mxu0 0.0
        %414 = vmatmul.mubr.f32.gmra.mxu0 %v204
        %v415 = vpop.f32.mrf.mxu0
        %v416 = vadd.f32 %v233, %v415
        %v417 = vpop.f32.mrf.mxu0
        %418 = vmatprep.mubr.f32.mxu0 0.0
        %419 = vmatmul.mubr.f32.gmra.mxu0 %v205
        %v420 = vpop.f32.mrf.mxu0
        %v421 = vadd.f32 %v233, %v420
        %v422 = vpop.f32.mrf.mxu0
        %423 = vmatprep.mubr.f32.mxu0 0.0
        %424 = vmatmul.mubr.f32.gmra.mxu0 %v206
        %v425 = vpop.f32.mrf.mxu0
        %v426 = vadd.f32 %v233, %v425
        %v427 = vpop.f32.mrf.mxu0
        %428 = vmatprep.mubr.f32.mxu0 0.0
        %429 = vmatmul.mubr.f32.gmra.mxu0 %v207
        %v430 = vpop.f32.mrf.mxu0
        %v431 = vadd.f32 %v233, %v430
        %v432 = vpop.f32.mrf.mxu0
        %433 = vmatprep.mubr.f32.mxu0 0.0
        %434 = vmatmul.mubr.f32.gmra.mxu0 %v208
        %v435 = vpop.f32.mrf.mxu0
        %v436 = vadd.f32 %v233, %v435
        %v437 = vpop.f32.mrf.mxu0
        %438 = vmatprep.mubr.f32.mxu0 0.0
        %439 = vmatmul.mubr.f32.gmra.mxu0 %v209
        %v440 = vpop.f32.mrf.mxu0
        %v441 = vadd.f32 %v233, %v440
        %v442 = vpop.f32.mrf.mxu0
        %443 = vmatprep.mubr.f32.mxu0 0.0
        %444 = vmatmul.mubr.f32.gmra.mxu0 %v210
        %v445 = vpop.f32.mrf.mxu0
        %v446 = vadd.f32 %v233, %v445
        %v447 = vpop.f32.mrf.mxu0
        %448 = vmatprep.mubr.f32.mxu0 0.0
        %449 = vmatmul.mubr.f32.gmra.mxu0 %v211
        %v450 = vpop.f32.mrf.mxu0
        %v451 = vadd.f32 %v233, %v450
        %v452 = vpop.f32.mrf.mxu0
        %453 = vmatprep.mubr.f32.mxu0 0.0
        %454 = vmatmul.mubr.f32.gmra.mxu0 %v212
        %v455 = vpop.f32.mrf.mxu0
        %v456 = vadd.f32 %v233, %v455
        %v457 = vpop.f32.mrf.mxu0
        %458 = vdwg.mxu0
        %v459 = vmul.f32 %v301, 0.5
        %v460 = vmul.f32 %v306, 0.5
        %v461 = vmul.f32 %v311, 0.5
        %v462 = vmul.f32 %v316, 0.5
        %v463 = vmul.f32 %v321, 0.5
        %v464 = vmul.f32 %v326, 0.5
        %v465 = vmul.f32 %v331, 0.5
        %v466 = vmul.f32 %v336, 0.5
        %v467 = vmul.f32 %v341, 0.5
        %v468 = vmul.f32 %v346, 0.5
        %v469 = vmul.f32 %v351, 0.5
        %v470 = vmul.f32 %v356, 0.5
        %v471 = vmul.f32 %v361, 0.5
        %v472 = vmul.f32 %v366, 0.5
        %v473 = vmul.f32 %v371, 0.5
        %v474 = vmul.f32 %v376, 0.5
        %v475 = vmul.f32 %v381, 0.5
        %v476 = vmul.f32 %v386, 0.5
        %v477 = vmul.f32 %v391, 0.5
        %v478 = vmul.f32 %v396, 0.5
        %v479 = vmul.f32 %v401, 0.5
        %v480 = vmul.f32 %v406, 0.5
        %v481 = vmul.f32 %v411, 0.5
        %v482 = vmul.f32 %v416, 0.5
        %v483 = vmul.f32 %v421, 0.5
        %v484 = vmul.f32 %v426, 0.5
        %v485 = vmul.f32 %v431, 0.5
        %v486 = vmul.f32 %v436, 0.5
        %v487 = vmul.f32 %v441, 0.5
        %v488 = vmul.f32 %v446, 0.5
        %v489 = vmul.f32 %v451, 0.5
        %v490 = vmul.f32 %v456, 0.5
        %v491 = vtanh.pop %v459
        %v492 = vtanh.pop %v460
        %v493 = vtanh.pop %v461
        %v494 = vtanh.pop %v462
        %v495 = vtanh.pop %v463
        %v496 = vtanh.pop %v464
        %v497 = vtanh.pop %v465
        %v498 = vtanh.pop %v466
        %v499 = vtanh.pop %v467
        %v500 = vtanh.pop %v468
        %v501 = vtanh.pop %v469
        %v502 = vtanh.pop %v470
        %v503 = vtanh.pop %v471
        %v504 = vtanh.pop %v472
        %v505 = vtanh.pop %v473
        %v506 = vtanh.pop %v474
        %v507 = vtanh.pop %v475
        %v508 = vtanh.pop %v476
        %v509 = vtanh.pop %v477
        %v510 = vtanh.pop %v478
        %v511 = vtanh.pop %v479
        %v512 = vtanh.pop %v480
        %v513 = vtanh.pop %v481
        %v514 = vtanh.pop %v482
        %v515 = vtanh.pop %v483
        %v516 = vtanh.pop %v484
        %v517 = vtanh.pop %v485
        %v518 = vtanh.pop %v486
        %v519 = vtanh.pop %v487
        %v520 = vtanh.pop %v488
        %v521 = vtanh.pop %v489
        %v522 = vtanh.pop %v490
        %v523 = vmul.f32 %v491, 0.5
        %v524 = vmul.f32 %v492, 0.5
        %v525 = vmul.f32 %v493, 0.5
        %v526 = vmul.f32 %v494, 0.5
        %v527 = vmul.f32 %v495, 0.5
        %v528 = vmul.f32 %v496, 0.5
        %v529 = vmul.f32 %v497, 0.5
        %v530 = vmul.f32 %v498, 0.5
        %v531 = vmul.f32 %v499, 0.5
        %v532 = vmul.f32 %v500, 0.5
        %v533 = vmul.f32 %v501, 0.5
        %v534 = vmul.f32 %v502, 0.5
        %v535 = vmul.f32 %v503, 0.5
        %v536 = vmul.f32 %v504, 0.5
        %v537 = vmul.f32 %v505, 0.5
        %v538 = vmul.f32 %v506, 0.5
        %v539 = vmul.f32 %v507, 0.5
        %v540 = vmul.f32 %v508, 0.5
        %v541 = vmul.f32 %v509, 0.5
        %v542 = vmul.f32 %v510, 0.5
        %v543 = vmul.f32 %v511, 0.5
        %v544 = vmul.f32 %v512, 0.5
        %v545 = vmul.f32 %v513, 0.5
        %v546 = vmul.f32 %v514, 0.5
        %v547 = vmul.f32 %v515, 0.5
        %v548 = vmul.f32 %v516, 0.5
        %v549 = vmul.f32 %v517, 0.5
        %v550 = vmul.f32 %v518, 0.5
        %v551 = vmul.f32 %v519, 0.5
        %v552 = vmul.f32 %v520, 0.5
        %v553 = vmul.f32 %v521, 0.5
        %v554 = vmul.f32 %v522, 0.5
        %v555 = vadd.f32 %v523, 0.5
        %v556 = vadd.f32 %v524, 0.5
        %v557 = vadd.f32 %v525, 0.5
        %v558 = vadd.f32 %v526, 0.5
        %v559 = vadd.f32 %v527, 0.5
        %v560 = vadd.f32 %v528, 0.5
        %v561 = vadd.f32 %v529, 0.5
        %v562 = vadd.f32 %v530, 0.5
        %v563 = vadd.f32 %v531, 0.5
        %v564 = vadd.f32 %v532, 0.5
        %v565 = vadd.f32 %v533, 0.5
        %v566 = vadd.f32 %v534, 0.5
        %v567 = vadd.f32 %v535, 0.5
        %v568 = vadd.f32 %v536, 0.5
        %v569 = vadd.f32 %v537, 0.5
        %v570 = vadd.f32 %v538, 0.5
        %v571 = vadd.f32 %v539, 0.5
        %v572 = vadd.f32 %v540, 0.5
        %v573 = vadd.f32 %v541, 0.5
        %v574 = vadd.f32 %v542, 0.5
        %v575 = vadd.f32 %v543, 0.5
        %v576 = vadd.f32 %v544, 0.5
        %v577 = vadd.f32 %v545, 0.5
        %v578 = vadd.f32 %v546, 0.5
        %v579 = vadd.f32 %v547, 0.5
        %v580 = vadd.f32 %v548, 0.5
        %v581 = vadd.f32 %v549, 0.5
        %v582 = vadd.f32 %v550, 0.5
        %v583 = vadd.f32 %v551, 0.5
        %v584 = vadd.f32 %v552, 0.5
        %v585 = vadd.f32 %v553, 0.5
        %v586 = vadd.f32 %v554, 0.5
        %v587 = vld [vmem:[#allocation4 + $0x88] sm:$0xff]
        %v588 = vld [vmem:[#allocation4 + $0x90] sm:$0xff]
        %v589 = vld [vmem:[#allocation4 + $0x98] sm:$0xff]
        %v590 = vld [vmem:[#allocation4 + $0xa0] sm:$0xff]
        %v591 = vld [vmem:[#allocation4 + $0xa8] sm:$0xff]
        %v592 = vld [vmem:[#allocation4 + $0xb0] sm:$0xff]
        %v593 = vld [vmem:[#allocation4 + $0xb8] sm:$0xff]
        %v594 = vld [vmem:[#allocation4 + $0xc0] sm:$0xff]
        %v595 = vld [vmem:[#allocation4 + $0xc8] sm:$0xff]
        %v596 = vld [vmem:[#allocation4 + $0xd0] sm:$0xff]
        %v597 = vld [vmem:[#allocation4 + $0xd8] sm:$0xff]
        %v598 = vld [vmem:[#allocation4 + $0xe0] sm:$0xff]
        %v599 = vld [vmem:[#allocation4 + $0xe8] sm:$0xff]
        %v600 = vld [vmem:[#allocation4 + $0xf0] sm:$0xff]
        %v601 = vld [vmem:[#allocation4 + $0xf8] sm:$0xff]
        %v602 = vld [vmem:[#allocation4 + $0x100] sm:$0xff]
        %v603 = vld [vmem:[#allocation4 + $0x108] sm:$0x1]
        %v604 = vlaneseq
        %v605 = vshrl.u32 %v604, 7
        %v606 = vsub.s32 0, %v605
        %v607 = vrot.slane %v603, %v606
        %608 = vmatprep.subr.mxu0 0.0
        %609 = vmatpush1.msra.mxu0 %v602
        %610 = vmatprep.subr.mxu0 0.0
        %611 = vmatpush1.msra.mxu0 %v601
        %612 = vmatprep.subr.mxu0 0.0
        %613 = vmatpush1.msra.mxu0 %v600
        %614 = vmatprep.subr.mxu0 0.0
        %615 = vmatpush1.msra.mxu0 %v599
        %616 = vmatprep.subr.mxu0 0.0
        %617 = vmatpush1.msra.mxu0 %v598
        %618 = vmatprep.subr.mxu0 0.0
        %619 = vmatpush1.msra.mxu0 %v597
        %620 = vmatprep.subr.mxu0 0.0
        %621 = vmatpush1.msra.mxu0 %v596
        %622 = vmatprep.subr.mxu0 0.0
        %623 = vmatpush1.msra.mxu0 %v595
        %624 = vmatprep.subr.mxu0 0.0
        %625 = vmatpush1.msra.mxu0 %v594
        %626 = vmatprep.subr.mxu0 0.0
        %627 = vmatpush1.msra.mxu0 %v593
        %628 = vmatprep.subr.mxu0 0.0
        %629 = vmatpush1.msra.mxu0 %v592
        %630 = vmatprep.subr.mxu0 0.0
        %631 = vmatpush1.msra.mxu0 %v591
        %632 = vmatprep.subr.mxu0 0.0
        %633 = vmatpush1.msra.mxu0 %v590
        %634 = vmatprep.subr.mxu0 0.0
        %635 = vmatpush1.msra.mxu0 %v589
        %636 = vmatprep.subr.mxu0 0.0
        %637 = vmatpush1.msra.mxu0 %v588
        %638 = vmatprep.subr.mxu0 0.0
        %639 = vmatpush1.msra.mxu0 %v587
        %640 = vmatprep.subr.mxu0 0.0
        %641 = vmatpush2.msra.mxu0 0.0
        %642 = vmatprep.subr.mxu0 0.0
        %643 = vmatpush2.msra.mxu0 0.0
        %644 = vmatprep.subr.mxu0 0.0
        %645 = vmatpush2.msra.mxu0 0.0
        %646 = vmatprep.subr.mxu0 0.0
        %647 = vmatpush2.msra.mxu0 0.0
        %648 = vmatprep.subr.mxu0 0.0
        %649 = vmatpush2.msra.mxu0 0.0
        %650 = vmatprep.subr.mxu0 0.0
        %651 = vmatpush2.msra.mxu0 0.0
        %652 = vmatprep.subr.mxu0 0.0
        %653 = vmatpush2.msra.mxu0 0.0
        %654 = vmatprep.subr.mxu0 0.0
        %655 = vmatpush2.msra.mxu0 0.0
        %656 = vmatprep.subr.mxu0 0.0
        %657 = vmatpush2.msra.mxu0 0.0
        %658 = vmatprep.subr.mxu0 0.0
        %659 = vmatpush2.msra.mxu0 0.0
        %660 = vmatprep.subr.mxu0 0.0
        %661 = vmatpush2.msra.mxu0 0.0
        %662 = vmatprep.subr.mxu0 0.0
        %663 = vmatpush2.msra.mxu0 0.0
        %664 = vmatprep.subr.mxu0 0.0
        %665 = vmatpush2.msra.mxu0 0.0
        %666 = vmatprep.subr.mxu0 0.0
        %667 = vmatpush2.msra.mxu0 0.0
        %668 = vmatprep.subr.mxu0 0.0
        %669 = vmatpush2.msra.mxu0 0.0
        %670 = vmatprep.subr.mxu0 0.0
        %671 = vmatpush2.msra.mxu0 0.0
        %672 = vmatprep.mubr.f32.mxu0 0.0
        %673 = vmatmul.mubr.f32.gmra.mxu0 %v555
        %v674 = vpop.f32.mrf.mxu0
        %v675 = vadd.f32 %v607, %v674
        %v676 = vpop.f32.mrf.mxu0
        %677 = vmatprep.mubr.f32.mxu0 0.0
        %678 = vmatmul.mubr.f32.gmra.mxu0 %v556
        %v679 = vpop.f32.mrf.mxu0
        %v680 = vadd.f32 %v607, %v679
        %v681 = vpop.f32.mrf.mxu0
        %682 = vmatprep.mubr.f32.mxu0 0.0
        %683 = vmatmul.mubr.f32.gmra.mxu0 %v557
        %v684 = vpop.f32.mrf.mxu0
        %v685 = vadd.f32 %v607, %v684
        %v686 = vpop.f32.mrf.mxu0
        %687 = vmatprep.mubr.f32.mxu0 0.0
        %688 = vmatmul.mubr.f32.gmra.mxu0 %v558
        %v689 = vpop.f32.mrf.mxu0
        %v690 = vadd.f32 %v607, %v689
        %v691 = vpop.f32.mrf.mxu0
        %692 = vmatprep.mubr.f32.mxu0 0.0
        %693 = vmatmul.mubr.f32.gmra.mxu0 %v559
        %v694 = vpop.f32.mrf.mxu0
        %v695 = vadd.f32 %v607, %v694
        %v696 = vpop.f32.mrf.mxu0
        %697 = vmatprep.mubr.f32.mxu0 0.0
        %698 = vmatmul.mubr.f32.gmra.mxu0 %v560
        %v699 = vpop.f32.mrf.mxu0
        %v700 = vadd.f32 %v607, %v699
        %v701 = vpop.f32.mrf.mxu0
        %702 = vmatprep.mubr.f32.mxu0 0.0
        %703 = vmatmul.mubr.f32.gmra.mxu0 %v561
        %v704 = vpop.f32.mrf.mxu0
        %v705 = vadd.f32 %v607, %v704
        %v706 = vpop.f32.mrf.mxu0
        %707 = vmatprep.mubr.f32.mxu0 0.0
        %708 = vmatmul.mubr.f32.gmra.mxu0 %v562
        %v709 = vpop.f32.mrf.mxu0
        %v710 = vadd.f32 %v607, %v709
        %v711 = vpop.f32.mrf.mxu0
        %712 = vmatprep.mubr.f32.mxu0 0.0
        %713 = vmatmul.mubr.f32.gmra.mxu0 %v563
        %v714 = vpop.f32.mrf.mxu0
        %v715 = vadd.f32 %v607, %v714
        %v716 = vpop.f32.mrf.mxu0
        %717 = vmatprep.mubr.f32.mxu0 0.0
        %718 = vmatmul.mubr.f32.gmra.mxu0 %v564
        %v719 = vpop.f32.mrf.mxu0
        %v720 = vadd.f32 %v607, %v719
        %v721 = vpop.f32.mrf.mxu0
        %722 = vmatprep.mubr.f32.mxu0 0.0
        %723 = vmatmul.mubr.f32.gmra.mxu0 %v565
        %v724 = vpop.f32.mrf.mxu0
        %v725 = vadd.f32 %v607, %v724
        %v726 = vpop.f32.mrf.mxu0
        %727 = vmatprep.mubr.f32.mxu0 0.0
        %728 = vmatmul.mubr.f32.gmra.mxu0 %v566
        %v729 = vpop.f32.mrf.mxu0
        %v730 = vadd.f32 %v607, %v729
        %v731 = vpop.f32.mrf.mxu0
        %732 = vmatprep.mubr.f32.mxu0 0.0
        %733 = vmatmul.mubr.f32.gmra.mxu0 %v567
        %v734 = vpop.f32.mrf.mxu0
        %v735 = vadd.f32 %v607, %v734
        %v736 = vpop.f32.mrf.mxu0
        %737 = vmatprep.mubr.f32.mxu0 0.0
        %738 = vmatmul.mubr.f32.gmra.mxu0 %v568
        %v739 = vpop.f32.mrf.mxu0
        %v740 = vadd.f32 %v607, %v739
        %v741 = vpop.f32.mrf.mxu0
        %742 = vmatprep.mubr.f32.mxu0 0.0
        %743 = vmatmul.mubr.f32.gmra.mxu0 %v569
        %v744 = vpop.f32.mrf.mxu0
        %v745 = vadd.f32 %v607, %v744
        %v746 = vpop.f32.mrf.mxu0
        %747 = vmatprep.mubr.f32.mxu0 0.0
        %748 = vmatmul.mubr.f32.gmra.mxu0 %v570
        %v749 = vpop.f32.mrf.mxu0
        %v750 = vadd.f32 %v607, %v749
        %v751 = vpop.f32.mrf.mxu0
        %752 = vmatprep.mubr.f32.mxu0 0.0
        %753 = vmatmul.mubr.f32.gmra.mxu0 %v571
        %v754 = vpop.f32.mrf.mxu0
        %v755 = vadd.f32 %v607, %v754
        %v756 = vpop.f32.mrf.mxu0
        %757 = vmatprep.mubr.f32.mxu0 0.0
        %758 = vmatmul.mubr.f32.gmra.mxu0 %v572
        %v759 = vpop.f32.mrf.mxu0
        %v760 = vadd.f32 %v607, %v759
        %v761 = vpop.f32.mrf.mxu0
        %762 = vmatprep.mubr.f32.mxu0 0.0
        %763 = vmatmul.mubr.f32.gmra.mxu0 %v573
        %v764 = vpop.f32.mrf.mxu0
        %v765 = vadd.f32 %v607, %v764
        %v766 = vpop.f32.mrf.mxu0
        %767 = vmatprep.mubr.f32.mxu0 0.0
        %768 = vmatmul.mubr.f32.gmra.mxu0 %v574
        %v769 = vpop.f32.mrf.mxu0
        %v770 = vadd.f32 %v607, %v769
        %v771 = vpop.f32.mrf.mxu0
        %772 = vmatprep.mubr.f32.mxu0 0.0
        %773 = vmatmul.mubr.f32.gmra.mxu0 %v575
        %v774 = vpop.f32.mrf.mxu0
        %v775 = vadd.f32 %v607, %v774
        %v776 = vpop.f32.mrf.mxu0
        %777 = vmatprep.mubr.f32.mxu0 0.0
        %778 = vmatmul.mubr.f32.gmra.mxu0 %v576
        %v779 = vpop.f32.mrf.mxu0
        %v780 = vadd.f32 %v607, %v779
        %v781 = vpop.f32.mrf.mxu0
        %782 = vmatprep.mubr.f32.mxu0 0.0
        %783 = vmatmul.mubr.f32.gmra.mxu0 %v577
        %v784 = vpop.f32.mrf.mxu0
        %v785 = vadd.f32 %v607, %v784
        %v786 = vpop.f32.mrf.mxu0
        %787 = vmatprep.mubr.f32.mxu0 0.0
        %788 = vmatmul.mubr.f32.gmra.mxu0 %v578
        %v789 = vpop.f32.mrf.mxu0
        %v790 = vadd.f32 %v607, %v789
        %v791 = vpop.f32.mrf.mxu0
        %792 = vmatprep.mubr.f32.mxu0 0.0
        %793 = vmatmul.mubr.f32.gmra.mxu0 %v579
        %v794 = vpop.f32.mrf.mxu0
        %v795 = vadd.f32 %v607, %v794
        %v796 = vpop.f32.mrf.mxu0
        %797 = vmatprep.mubr.f32.mxu0 0.0
        %798 = vmatmul.mubr.f32.gmra.mxu0 %v580
        %v799 = vpop.f32.mrf.mxu0
        %v800 = vadd.f32 %v607, %v799
        %v801 = vpop.f32.mrf.mxu0
        %802 = vmatprep.mubr.f32.mxu0 0.0
        %803 = vmatmul.mubr.f32.gmra.mxu0 %v581
        %v804 = vpop.f32.mrf.mxu0
        %v805 = vadd.f32 %v607, %v804
        %v806 = vpop.f32.mrf.mxu0
        %807 = vmatprep.mubr.f32.mxu0 0.0
        %808 = vmatmul.mubr.f32.gmra.mxu0 %v582
        %v809 = vpop.f32.mrf.mxu0
        %v810 = vadd.f32 %v607, %v809
        %v811 = vpop.f32.mrf.mxu0
        %812 = vmatprep.mubr.f32.mxu0 0.0
        %813 = vmatmul.mubr.f32.gmra.mxu0 %v583
        %v814 = vpop.f32.mrf.mxu0
        %v815 = vadd.f32 %v607, %v814
        %v816 = vpop.f32.mrf.mxu0
        %817 = vmatprep.mubr.f32.mxu0 0.0
        %818 = vmatmul.mubr.f32.gmra.mxu0 %v584
        %v819 = vpop.f32.mrf.mxu0
        %v820 = vadd.f32 %v607, %v819
        %v821 = vpop.f32.mrf.mxu0
        %822 = vmatprep.mubr.f32.mxu0 0.0
        %823 = vmatmul.mubr.f32.gmra.mxu0 %v585
        %v824 = vpop.f32.mrf.mxu0
        %v825 = vadd.f32 %v607, %v824
        %v826 = vpop.f32.mrf.mxu0
        %827 = vmatprep.mubr.f32.mxu0 0.0
        %828 = vmatmul.mubr.f32.gmra.mxu0 %v586
        %v829 = vpop.f32.mrf.mxu0
        %v830 = vadd.f32 %v607, %v829
        %v831 = vpop.f32.mrf.mxu0
        %832 = vdwg.mxu0
        %v833 = vmul.f32 %v675, 0.5
        %v834 = vmul.f32 %v680, 0.5
        %v835 = vmul.f32 %v685, 0.5
        %v836 = vmul.f32 %v690, 0.5
        %v837 = vmul.f32 %v695, 0.5
        %v838 = vmul.f32 %v700, 0.5
        %v839 = vmul.f32 %v705, 0.5
        %v840 = vmul.f32 %v710, 0.5
        %v841 = vmul.f32 %v715, 0.5
        %v842 = vmul.f32 %v720, 0.5
        %v843 = vmul.f32 %v725, 0.5
        %v844 = vmul.f32 %v730, 0.5
        %v845 = vmul.f32 %v735, 0.5
        %v846 = vmul.f32 %v740, 0.5
        %v847 = vmul.f32 %v745, 0.5
        %v848 = vmul.f32 %v750, 0.5
        %v849 = vmul.f32 %v755, 0.5
        %v850 = vmul.f32 %v760, 0.5
        %v851 = vmul.f32 %v765, 0.5
        %v852 = vmul.f32 %v770, 0.5
        %v853 = vmul.f32 %v775, 0.5
        %v854 = vmul.f32 %v780, 0.5
        %v855 = vmul.f32 %v785, 0.5
        %v856 = vmul.f32 %v790, 0.5
        %v857 = vmul.f32 %v795, 0.5
        %v858 = vmul.f32 %v800, 0.5
        %v859 = vmul.f32 %v805, 0.5
        %v860 = vmul.f32 %v810, 0.5
        %v861 = vmul.f32 %v815, 0.5
        %v862 = vmul.f32 %v820, 0.5
        %v863 = vmul.f32 %v825, 0.5
        %v864 = vmul.f32 %v830, 0.5
        %v865 = vtanh.pop %v833
        %v866 = vtanh.pop %v834
        %v867 = vtanh.pop %v835
        %v868 = vtanh.pop %v836
        %v869 = vtanh.pop %v837
        %v870 = vtanh.pop %v838
        %v871 = vtanh.pop %v839
        %v872 = vtanh.pop %v840
        %v873 = vtanh.pop %v841
        %v874 = vtanh.pop %v842
        %v875 = vtanh.pop %v843
        %v876 = vtanh.pop %v844
        %v877 = vtanh.pop %v845
        %v878 = vtanh.pop %v846
        %v879 = vtanh.pop %v847
        %v880 = vtanh.pop %v848
        %v881 = vtanh.pop %v849
        %v882 = vtanh.pop %v850
        %v883 = vtanh.pop %v851
        %v884 = vtanh.pop %v852
        %v885 = vtanh.pop %v853
        %v886 = vtanh.pop %v854
        %v887 = vtanh.pop %v855
        %v888 = vtanh.pop %v856
        %v889 = vtanh.pop %v857
        %v890 = vtanh.pop %v858
        %v891 = vtanh.pop %v859
        %v892 = vtanh.pop %v860
        %v893 = vtanh.pop %v861
        %v894 = vtanh.pop %v862
        %v895 = vtanh.pop %v863
        %v896 = vtanh.pop %v864
        %v897 = vmul.f32 %v865, 0.5
        %v898 = vmul.f32 %v866, 0.5
        %v899 = vmul.f32 %v867, 0.5
        %v900 = vmul.f32 %v868, 0.5
        %v901 = vmul.f32 %v869, 0.5
        %v902 = vmul.f32 %v870, 0.5
        %v903 = vmul.f32 %v871, 0.5
        %v904 = vmul.f32 %v872, 0.5
        %v905 = vmul.f32 %v873, 0.5
        %v906 = vmul.f32 %v874, 0.5
        %v907 = vmul.f32 %v875, 0.5
        %v908 = vmul.f32 %v876, 0.5
        %v909 = vmul.f32 %v877, 0.5
        %v910 = vmul.f32 %v878, 0.5
        %v911 = vmul.f32 %v879, 0.5
        %v912 = vmul.f32 %v880, 0.5
        %v913 = vmul.f32 %v881, 0.5
        %v914 = vmul.f32 %v882, 0.5
        %v915 = vmul.f32 %v883, 0.5
        %v916 = vmul.f32 %v884, 0.5
        %v917 = vmul.f32 %v885, 0.5
        %v918 = vmul.f32 %v886, 0.5
        %v919 = vmul.f32 %v887, 0.5
        %v920 = vmul.f32 %v888, 0.5
        %v921 = vmul.f32 %v889, 0.5
        %v922 = vmul.f32 %v890, 0.5
        %v923 = vmul.f32 %v891, 0.5
        %v924 = vmul.f32 %v892, 0.5
        %v925 = vmul.f32 %v893, 0.5
        %v926 = vmul.f32 %v894, 0.5
        %v927 = vmul.f32 %v895, 0.5
        %v928 = vmul.f32 %v896, 0.5
        %v929 = vadd.f32 %v897, 0.5
        %v930 = vadd.f32 %v898, 0.5
        %v931 = vadd.f32 %v899, 0.5
        %v932 = vadd.f32 %v900, 0.5
        %v933 = vadd.f32 %v901, 0.5
        %v934 = vadd.f32 %v902, 0.5
        %v935 = vadd.f32 %v903, 0.5
        %v936 = vadd.f32 %v904, 0.5
        %v937 = vadd.f32 %v905, 0.5
        %v938 = vadd.f32 %v906, 0.5
        %v939 = vadd.f32 %v907, 0.5
        %v940 = vadd.f32 %v908, 0.5
        %v941 = vadd.f32 %v909, 0.5
        %v942 = vadd.f32 %v910, 0.5
        %v943 = vadd.f32 %v911, 0.5
        %v944 = vadd.f32 %v912, 0.5
        %v945 = vadd.f32 %v913, 0.5
        %v946 = vadd.f32 %v914, 0.5
        %v947 = vadd.f32 %v915, 0.5
        %v948 = vadd.f32 %v916, 0.5
        %v949 = vadd.f32 %v917, 0.5
        %v950 = vadd.f32 %v918, 0.5
        %v951 = vadd.f32 %v919, 0.5
        %v952 = vadd.f32 %v920, 0.5
        %v953 = vadd.f32 %v921, 0.5
        %v954 = vadd.f32 %v922, 0.5
        %v955 = vadd.f32 %v923, 0.5
        %v956 = vadd.f32 %v924, 0.5
        %v957 = vadd.f32 %v925, 0.5
        %v958 = vadd.f32 %v926, 0.5
        %v959 = vadd.f32 %v927, 0.5
        %v960 = vadd.f32 %v928, 0.5
        %v961 = vld [vmem:[#allocation4 + $0x110] sm:$0x1]
        %v962 = vld [vmem:[#allocation4 + $0x111] sm:$0x1]
        %v963 = vlaneseq
        %v964 = vshrl.u32 %v963, 7
        %v965 = vsub.s32 0, %v964
        %v966 = vrot.slane %v961, %v965
        %v967 = vmul.f32 %v929, %v966
        %v968 = vmul.f32 %v930, %v966
        %v969 = vmul.f32 %v931, %v966
        %v970 = vmul.f32 %v932, %v966
        %v971 = vmul.f32 %v933, %v966
        %v972 = vmul.f32 %v934, %v966
        %v973 = vmul.f32 %v935, %v966
        %v974 = vmul.f32 %v936, %v966
        %v975 = vmul.f32 %v937, %v966
        %v976 = vmul.f32 %v938, %v966
        %v977 = vmul.f32 %v939, %v966
        %v978 = vmul.f32 %v940, %v966
        %v979 = vmul.f32 %v941, %v966
        %v980 = vmul.f32 %v942, %v966
        %v981 = vmul.f32 %v943, %v966
        %v982 = vmul.f32 %v944, %v966
        %v983 = vmul.f32 %v945, %v966
        %v984 = vmul.f32 %v946, %v966
        %v985 = vmul.f32 %v947, %v966
        %v986 = vmul.f32 %v948, %v966
        %v987 = vmul.f32 %v949, %v966
        %v988 = vmul.f32 %v950, %v966
        %v989 = vmul.f32 %v951, %v966
        %v990 = vmul.f32 %v952, %v966
        %v991 = vmul.f32 %v953, %v966
        %v992 = vmul.f32 %v954, %v966
        %v993 = vmul.f32 %v955, %v966
        %v994 = vmul.f32 %v956, %v966
        %v995 = vmul.f32 %v957, %v966
        %v996 = vmul.f32 %v958, %v966
        %v997 = vmul.f32 %v959, %v966
        %v998 = vmul.f32 %v960, %v966
        %v999 = vlaneseq
        %v1000 = vshrl.u32 %v999, 7
        %v1001 = vsub.s32 0, %v1000
        %v1002 = vrot.slane %v962, %v1001
        %v1003 = vadd.f32 %v967, %v1002
        %v1004 = vadd.f32 %v968, %v1002
        %v1005 = vadd.f32 %v969, %v1002
        %v1006 = vadd.f32 %v970, %v1002
        %v1007 = vadd.f32 %v971, %v1002
        %v1008 = vadd.f32 %v972, %v1002
        %v1009 = vadd.f32 %v973, %v1002
        %v1010 = vadd.f32 %v974, %v1002
        %v1011 = vadd.f32 %v975, %v1002
        %v1012 = vadd.f32 %v976, %v1002
        %v1013 = vadd.f32 %v977, %v1002
        %v1014 = vadd.f32 %v978, %v1002
        %v1015 = vadd.f32 %v979, %v1002
        %v1016 = vadd.f32 %v980, %v1002
        %v1017 = vadd.f32 %v981, %v1002
        %v1018 = vadd.f32 %v982, %v1002
        %v1019 = vadd.f32 %v983, %v1002
        %v1020 = vadd.f32 %v984, %v1002
        %v1021 = vadd.f32 %v985, %v1002
        %v1022 = vadd.f32 %v986, %v1002
        %v1023 = vadd.f32 %v987, %v1002
        %v1024 = vadd.f32 %v988, %v1002
        %v1025 = vadd.f32 %v989, %v1002
        %v1026 = vadd.f32 %v990, %v1002
        %v1027 = vadd.f32 %v991, %v1002
        %v1028 = vadd.f32 %v992, %v1002
        %v1029 = vadd.f32 %v993, %v1002
        %v1030 = vadd.f32 %v994, %v1002
        %v1031 = vadd.f32 %v995, %v1002
        %v1032 = vadd.f32 %v996, %v1002
        %v1033 = vadd.f32 %v997, %v1002
        %v1034 = vadd.f32 %v998, %v1002
        %1035 = vadd.xlane.f32.xlu0 %v1003
        %v1036 = vpop.xlane.xlu0 %1035
        %1037 = vadd.xlane.f32.xlu0 %v1004
        %v1038 = vpop.xlane.xlu0 %1037
        %1039 = vadd.xlane.f32.xlu0 %v1005
        %v1040 = vpop.xlane.xlu0 %1039
        %1041 = vadd.xlane.f32.xlu0 %v1006
        %v1042 = vpop.xlane.xlu0 %1041
        %1043 = vadd.xlane.f32.xlu0 %v1007
        %v1044 = vpop.xlane.xlu0 %1043
        %1045 = vadd.xlane.f32.xlu0 %v1008
        %v1046 = vpop.xlane.xlu0 %1045
        %1047 = vadd.xlane.f32.xlu0 %v1009
        %v1048 = vpop.xlane.xlu0 %1047
        %1049 = vadd.xlane.f32.xlu0 %v1010
        %v1050 = vpop.xlane.xlu0 %1049
        %1051 = vadd.xlane.f32.xlu0 %v1011
        %v1052 = vpop.xlane.xlu0 %1051
        %1053 = vadd.xlane.f32.xlu0 %v1012
        %v1054 = vpop.xlane.xlu0 %1053
        %1055 = vadd.xlane.f32.xlu0 %v1013
        %v1056 = vpop.xlane.xlu0 %1055
        %1057 = vadd.xlane.f32.xlu0 %v1014
        %v1058 = vpop.xlane.xlu0 %1057
        %1059 = vadd.xlane.f32.xlu0 %v1015
        %v1060 = vpop.xlane.xlu0 %1059
        %1061 = vadd.xlane.f32.xlu0 %v1016
        %v1062 = vpop.xlane.xlu0 %1061
        %1063 = vadd.xlane.f32.xlu0 %v1017
        %v1064 = vpop.xlane.xlu0 %1063
        %1065 = vadd.xlane.f32.xlu0 %v1018
        %v1066 = vpop.xlane.xlu0 %1065
        %1067 = vadd.xlane.f32.xlu0 %v1019
        %v1068 = vpop.xlane.xlu0 %1067
        %1069 = vadd.xlane.f32.xlu0 %v1020
        %v1070 = vpop.xlane.xlu0 %1069
        %1071 = vadd.xlane.f32.xlu0 %v1021
        %v1072 = vpop.xlane.xlu0 %1071
        %1073 = vadd.xlane.f32.xlu0 %v1022
        %v1074 = vpop.xlane.xlu0 %1073
        %1075 = vadd.xlane.f32.xlu0 %v1023
        %v1076 = vpop.xlane.xlu0 %1075
        %1077 = vadd.xlane.f32.xlu0 %v1024
        %v1078 = vpop.xlane.xlu0 %1077
        %1079 = vadd.xlane.f32.xlu0 %v1025
        %v1080 = vpop.xlane.xlu0 %1079
        %1081 = vadd.xlane.f32.xlu0 %v1026
        %v1082 = vpop.xlane.xlu0 %1081
        %1083 = vadd.xlane.f32.xlu0 %v1027
        %v1084 = vpop.xlane.xlu0 %1083
        %1085 = vadd.xlane.f32.xlu0 %v1028
        %v1086 = vpop.xlane.xlu0 %1085
        %1087 = vadd.xlane.f32.xlu0 %v1029
        %v1088 = vpop.xlane.xlu0 %1087
        %1089 = vadd.xlane.f32.xlu0 %v1030
        %v1090 = vpop.xlane.xlu0 %1089
        %1091 = vadd.xlane.f32.xlu0 %v1031
        %v1092 = vpop.xlane.xlu0 %1091
        %1093 = vadd.xlane.f32.xlu0 %v1032
        %v1094 = vpop.xlane.xlu0 %1093
        %1095 = vadd.xlane.f32.xlu0 %v1033
        %v1096 = vpop.xlane.xlu0 %1095
        %1097 = vadd.xlane.f32.xlu0 %v1034
        %v1098 = vpop.xlane.xlu0 %1097
        %vm1099 = vcmask 7168
        %1100 = vst.msk [vmem:[%s179] sm:$0xff] %vm1099, %v1036
        %1101 = vst.msk [vmem:[%s179 + $0x8] sm:$0xff] %vm1099, %v1038
        %1102 = vst.msk [vmem:[%s179 + $0x10] sm:$0xff] %vm1099, %v1040
        %1103 = vst.msk [vmem:[%s179 + $0x18] sm:$0xff] %vm1099, %v1042
        %1104 = vst.msk [vmem:[%s179 + $0x20] sm:$0xff] %vm1099, %v1044
        %1105 = vst.msk [vmem:[%s179 + $0x28] sm:$0xff] %vm1099, %v1046
        %1106 = vst.msk [vmem:[%s179 + $0x30] sm:$0xff] %vm1099, %v1048
        %1107 = vst.msk [vmem:[%s179 + $0x38] sm:$0xff] %vm1099, %v1050
        %1108 = vst.msk [vmem:[%s179 + $0x40] sm:$0xff] %vm1099, %v1052
        %1109 = vst.msk [vmem:[%s179 + $0x48] sm:$0xff] %vm1099, %v1054
        %1110 = vst.msk [vmem:[%s179 + $0x50] sm:$0xff] %vm1099, %v1056
        %1111 = vst.msk [vmem:[%s179 + $0x58] sm:$0xff] %vm1099, %v1058
        %1112 = vst.msk [vmem:[%s179 + $0x60] sm:$0xff] %vm1099, %v1060
        %1113 = vst.msk [vmem:[%s179 + $0x68] sm:$0xff] %vm1099, %v1062
        %1114 = vst.msk [vmem:[%s179 + $0x70] sm:$0xff] %vm1099, %v1064
        %1115 = vst.msk [vmem:[%s179 + $0x78] sm:$0xff] %vm1099, %v1066
        %1116 = vst.msk [vmem:[%s179 + $0x80] sm:$0xff] %vm1099, %v1068
        %1117 = vst.msk [vmem:[%s179 + $0x88] sm:$0xff] %vm1099, %v1070
        %1118 = vst.msk [vmem:[%s179 + $0x90] sm:$0xff] %vm1099, %v1072
        %1119 = vst.msk [vmem:[%s179 + $0x98] sm:$0xff] %vm1099, %v1074
        %1120 = vst.msk [vmem:[%s179 + $0xa0] sm:$0xff] %vm1099, %v1076
        %1121 = vst.msk [vmem:[%s179 + $0xa8] sm:$0xff] %vm1099, %v1078
        %1122 = vst.msk [vmem:[%s179 + $0xb0] sm:$0xff] %vm1099, %v1080
        %1123 = vst.msk [vmem:[%s179 + $0xb8] sm:$0xff] %vm1099, %v1082
        %1124 = vst.msk [vmem:[%s179 + $0xc0] sm:$0xff] %vm1099, %v1084
        %1125 = vst.msk [vmem:[%s179 + $0xc8] sm:$0xff] %vm1099, %v1086
        %1126 = vst.msk [vmem:[%s179 + $0xd0] sm:$0xff] %vm1099, %v1088
        %1127 = vst.msk [vmem:[%s179 + $0xd8] sm:$0xff] %vm1099, %v1090
        %1128 = vst.msk [vmem:[%s179 + $0xe0] sm:$0xff] %vm1099, %v1092
        %1129 = vst.msk [vmem:[%s179 + $0xe8] sm:$0xff] %vm1099, %v1094
        %1130 = vst.msk [vmem:[%s179 + $0xf0] sm:$0xff] %vm1099, %v1096
        %1131 = vst.msk [vmem:[%s179 + $0xf8] sm:$0xff] %vm1099, %v1098
        %s1132 = smul.u32 32, %s17
        %p1133 = scmp.lt.s32.totalorder %s1132, 63
        %s1134 = scalar_select %p1133, %s1132, 63
        %s1135 = smul.addr %s1134, 8
        %s1136 = scalar_lea.vmem %s2, %s1135
        // Predicated region
        $region37: #{tpu_custom_call.1} parent=27 // pred_check
          %p1137 = pneg %p82
        $region38: #{tpu_custom_call.1} parent=27 // pred_check_branch
          %1139 = sbr.rel (%p1137) target = $region40
        $region39: #{tpu_custom_call.1} parent=27 // pred_region
          %s1140 = smul.u32 32, %s17
        $region40: #{tpu_custom_call.1} parent=27 // pred_fallthru
          _
      $region28: #{tpu_custom_call.1} parent=5 // pred_fallthru
        _
      %p1141 = scmp.le.s32.totalorder 2, %s12
      // Predicated region
      $region41: #{tpu_custom_call.1} parent=5 // pred_check
        %p1142 = pneg %p1141
      $region42: #{tpu_custom_call.1} parent=5 // pred_check_branch
        %1144 = sbr.rel (%p1142) target = $region44
      $region43: #{tpu_custom_call.1} parent=5 // pred_region
        %s1145 = ssub.s32 %s12, 2
        // Predicated region
        $region45: #{tpu_custom_call.1} parent=43 // pred_check
          %p1146 = pneg %p88
        $region46: #{tpu_custom_call.1} parent=43 // pred_check_branch
          %1148 = sbr.rel (%p1146) target = $region48
        $region47: #{tpu_custom_call.1} parent=43 // pred_region
          %s1149 = smul.u32 32, %s18
          %p1150 = scmp.lt.s32.totalorder %s1149, 63
          %s1151 = scalar_select %p1150, %s1149, 63
          %s1152 = smul.addr %s1151, 8
          %s1153 = scalar_lea.vmem %s2, %s1152
        $region48: #{tpu_custom_call.1} parent=43 // pred_fallthru
          _
      $region44: #{tpu_custom_call.1} parent=5 // pred_fallthru
        _
    $region6: #{tpu_custom_call.1} parent=1 // loop_footer
      %s16 = sadd.s32 1, %s12
    $region7: #{tpu_custom_call.1} parent=1 // loop_footer_branch
      %11 = sbr.rel target = $region3
    $region8: #{tpu_custom_call.1} parent=1 // loop_exit
      _
    %1154 = vsyncpa [#allocation3], 1
    %s1155 = scalar_lea.sflag [#allocation3], 1
    %1156 = vsyncpa %s1155, 1
    %1157 = vsyncpa [#allocation5], 1

</llo_original>
